<compile_context>
chip_gen: v7x
topology: tpu7x:2x2x1
jax: 0.10.0
libtpu: 0.0.40
codegen_flags: <defaults>
</compile_context>

<pallas_src>
import functools

import jax
import jax.numpy as jnp
from jax.experimental import pallas as pl
from jax.experimental.pallas import tpu as pltpu


def _make_dice_kernel(hw, tile_hw, c):
    """Builds the kernel; hw/tile_hw/c are static Python ints."""
    need_mask = (hw % tile_hw) != 0

    def kernel(x_ref, t_ref, o_ref):
        j = pl.program_id(1)

        x = x_ref[0].astype(jnp.float32)          # (C, TILE) logits
        t = t_ref[0].astype(jnp.float32)          # (C, TILE) target (cast in VMEM)

        if need_mask:
            lane = jax.lax.broadcasted_iota(jnp.int32, (c, tile_hw), 1)
            valid = (j * tile_hw + lane) < hw
            x = jnp.where(valid, x, 0.0)          # keep softmax finite on padding
            t = jnp.where(valid, t, 0.0)

        # Channel-wise softmax per column (spatial location).
        m = jnp.max(x, axis=0, keepdims=True)
        e = jnp.exp(x - m)
        denom = jnp.sum(e, axis=0, keepdims=True)
        inv = pl.reciprocal(denom, approx=False)  # 1 reciprocal/col instead of C divides
        p = e * inv
        if need_mask:
            p = jnp.where(valid, p, 0.0)          # padded columns contribute nothing

        part = jnp.stack(
            [
                jnp.sum(p * t, axis=1),   # intersect per channel
                jnp.sum(p, axis=1),       # softmax-prob sum per channel
                jnp.sum(t, axis=1),       # target sum per channel
            ],
            axis=0,
        )                                  # (3, C)

        # Output block index is constant across j -> it stays resident in VMEM
        # and acts as the accumulator.
        @pl.when(j == 0)
        def _():
            o_ref[0] = part

        @pl.when(j > 0)
        def _():
            o_ref[0] = o_ref[0] + part

    return kernel


def _choose_tile_hw(hw, c, x_itemsize, t_itemsize, max_tile=8192):
    """Largest lane tile (multiple of 128) that amortizes per-step overhead
    while keeping double-buffered inputs well under the v7x scoped-VMEM default."""
    vmem_budget = 16 * 1024 * 1024                     # conservative (v7x: 32 MiB scoped)
    per_lane = 2 * c * (x_itemsize + t_itemsize)       # 2 buffers x both inputs
    cap = max(128, min(max_tile, (vmem_budget // per_lane) // 128 * 128))
    return hw if hw <= cap else cap                    # full-extent block is always legal


def _dice_partial_sums(x, t):
    """x, t: (N, C, HW). Returns (N, 3, C) f32 per-batch partial sums
    [intersect, prob_sum, target_sum]."""
    N, C, HW = x.shape
    assert t.shape == (N, C, HW)
    tile_hw = _choose_tile_hw(
        HW, C, jnp.dtype(x.dtype).itemsize, jnp.dtype(t.dtype).itemsize)
    num_j = pl.cdiv(HW, tile_hw)

    return pl.pallas_call(
        _make_dice_kernel(HW, tile_hw, C),
        out_shape=jax.ShapeDtypeStruct((N, 3, C), jnp.float32),
        grid_spec=pltpu.PrefetchScalarGridSpec(
            num_scalar_prefetch=0,
            grid=(N, num_j),
            in_specs=[
                pl.BlockSpec((1, C, tile_hw), lambda n, j: (n, 0, j)),
                pl.BlockSpec((1, C, tile_hw), lambda n, j: (n, 0, j)),
            ],
            out_specs=pl.BlockSpec((1, 3, C), lambda n, j: (n, 0, 0)),
        ),
        compiler_params=pltpu.CompilerParams(
            dimension_semantics=("parallel", "arbitrary"),
        ),
    )(x, t)


@functools.partial(jax.jit, static_argnames=("ignore_index", "smooth"))
def soft_dice_loss(output, target, ignore_index=None, smooth=1e-05):
    """JAX/Pallas equivalent of SoftDiceLoss.forward. Inputs are (N, C, *spatial)."""
    N, C = output.shape[0], output.shape[1]
    x = output.reshape(N, C, -1)        # free reshape, no transpose / extra HBM pass
    t = target.reshape(N, C, -1)        # keep original (possibly narrow) dtype for DMA

    sums = jnp.sum(_dice_partial_sums(x, t), axis=0)   # (3, C)
    intersect = sums[0]
    denominator = sums[1] + sums[2]

    if ignore_index is not None:
        keep = jnp.arange(C) != ignore_index
        intersect = jnp.where(keep, intersect, 0.0)
        denominator = jnp.where(keep, denominator, 0.0)

    dice = 2.0 * jnp.sum(intersect) / jnp.maximum(jnp.sum(denominator), smooth)
    return 1.0 - dice


def _reference_soft_dice_loss(output, target, ignore_index=None, smooth=1e-05):
    """Pure-JAX reference mirroring the PyTorch module."""
    C = output.shape[1]
    p = jax.nn.softmax(output, axis=1)
    p_f = jnp.moveaxis(p, 1, 0).reshape(C, -1)
    t_f = jnp.moveaxis(target, 1, 0).reshape(C, -1).astype(jnp.float32)
    intersect = jnp.sum(p_f * t_f, axis=-1)
    denominator = jnp.sum(p_f, axis=-1) + jnp.sum(t_f, axis=-1)
    if ignore_index is not None:
        keep = jnp.arange(C) != ignore_index
        intersect = intersect[keep]
        denominator = denominator[keep]
    dice = 2.0 * jnp.sum(intersect) / jnp.maximum(jnp.sum(denominator), smooth)
    return 1.0 - dice


if __name__ == "__main__":
    key = jax.random.PRNGKey(0)
    k1, k2, k3, k4 = jax.random.split(key, 4)

    # Case 1: small NCHW. One-hot target kept in a narrow dtype (bf16 one-hot is
    # exact); the kernel casts it to f32 in VMEM instead of paying f32 HBM BW.
    N, C, H, W = 2, 4, 16, 16
    logits = jax.random.normal(k1, (N, C, H, W), dtype=jnp.float32)
    labels = jax.random.randint(k2, (N, H, W), 0, C)
    target = jax.nn.one_hot(labels, C, axis=1, dtype=jnp.bfloat16)

    loss = jax.block_until_ready(soft_dice_loss(logits, target))
    ref = _reference_soft_dice_loss(logits, target)
    assert jnp.allclose(loss, ref, atol=1e-5, rtol=1e-5), (loss, ref)

    # Same inputs with ignore_index (wrapper-side channel masking).
    loss_ig = jax.block_until_ready(soft_dice_loss(logits, target, ignore_index=1))
    ref_ig = _reference_soft_dice_loss(logits, target, ignore_index=1)
    assert jnp.allclose(loss_ig, ref_ig, atol=1e-5, rtol=1e-5), (loss_ig, ref_ig)

    # Case 2: spatial extent larger than one lane tile and not a multiple of it
    # (HW = 96*97 = 9312 > 8192) -> exercises the masked trailing tile path.
    # Looser tolerance: f32 reduction order differs between the tiled kernel
    # and the monolithic XLA reference for the larger sum.
    N2, C2, H2, W2 = 1, 4, 96, 97
    logits2 = jax.random.normal(k3, (N2, C2, H2, W2), dtype=jnp.float32)
    labels2 = jax.random.randint(k4, (N2, H2, W2), 0, C2)
    target2 = jax.nn.one_hot(labels2, C2, axis=1, dtype=jnp.float32)

    loss2 = jax.block_until_ready(soft_dice_loss(logits2, target2))
    ref2 = _reference_soft_dice_loss(logits2, target2)
    assert jnp.allclose(loss2, ref2, atol=1e-4, rtol=1e-4), (loss2, ref2)

    print("KERNEL_OK")
</pallas_src>

<mosaic_0001>
module attributes {stable_mosaic.version = 11 : i64} {
  func.func @kernel(%arg0: i32, %arg1: i32, %arg2: memref<1x4x256xf32, #tpu.memory_space<vmem>>, %arg3: memref<1x4x256xbf16, #tpu.memory_space<vmem>>, %arg4: memref<1x3x4xf32, #tpu.memory_space<vmem>>) attributes {dimension_semantics = [#tpu.dimension_semantics<parallel>, #tpu.dimension_semantics<arbitrary>], iteration_bounds = array<i64: 2, 1>, scalar_prefetch = 0 : i64, scratch_operands = 0 : i64, tpu.core_type = #tpu.core_type<tc>, window_params = [{transform_indices = @transform_0, window_bounds = array<i64: 1, 4, 256>}, {transform_indices = @transform_1, window_bounds = array<i64: 1, 4, 256>}, {transform_indices = @transform_2, window_bounds = array<i64: 1, 3, 4>}]} {
    %c0 = arith.constant 0 : index
    %c0_0 = arith.constant 0 : index
    %c0_1 = arith.constant 0 : index
    %0 = vector.load %arg2[%c0, %c0_0, %c0_1] : memref<1x4x256xf32, #tpu.memory_space<vmem>>, vector<1x4x256xf32>
    %1 = vector.shape_cast %0 : vector<1x4x256xf32> to vector<4x256xf32>
    %c0_2 = arith.constant 0 : index
    %c0_3 = arith.constant 0 : index
    %c0_4 = arith.constant 0 : index
    %2 = vector.load %arg3[%c0_2, %c0_3, %c0_4] : memref<1x4x256xbf16, #tpu.memory_space<vmem>>, vector<1x4x256xbf16>
    %3 = vector.shape_cast %2 : vector<1x4x256xbf16> to vector<4x256xbf16>
    %4 = arith.extf %3 : vector<4x256xbf16> to vector<4x256xf32>
    %cst = arith.constant dense<0xFF800000> : vector<256xf32>
    %5 = vector.multi_reduction <maximumf>, %1, %cst [0] : vector<4x256xf32> to vector<256xf32>
    %6 = vector.shape_cast %5 : vector<256xf32> to vector<1x256xf32>
    %7 = vector.broadcast %6 : vector<1x256xf32> to vector<4x256xf32>
    %8 = arith.subf %1, %7 : vector<4x256xf32>
    %9 = math.exp %8 : vector<4x256xf32>
    %cst_5 = arith.constant dense<0.000000e+00> : vector<256xf32>
    %10 = vector.multi_reduction <add>, %9, %cst_5 [0] : vector<4x256xf32> to vector<256xf32>
    %11 = vector.shape_cast %10 : vector<256xf32> to vector<1x256xf32>
    %12 = tpu.reciprocal %11 : vector<1x256xf32> -> vector<1x256xf32>
    %13 = vector.broadcast %12 : vector<1x256xf32> to vector<4x256xf32>
    %14 = arith.mulf %9, %13 : vector<4x256xf32>
    %15 = arith.mulf %14, %4 : vector<4x256xf32>
    %cst_6 = arith.constant dense<0.000000e+00> : vector<4xf32>
    %16 = vector.multi_reduction <add>, %15, %cst_6 [1] : vector<4x256xf32> to vector<4xf32>
    %cst_7 = arith.constant dense<0.000000e+00> : vector<4xf32>
    %17 = vector.multi_reduction <add>, %14, %cst_7 [1] : vector<4x256xf32> to vector<4xf32>
    %cst_8 = arith.constant dense<0.000000e+00> : vector<4xf32>
    %18 = vector.multi_reduction <add>, %4, %cst_8 [1] : vector<4x256xf32> to vector<4xf32>
    %19 = vector.shape_cast %16 : vector<4xf32> to vector<1x4xf32>
    %20 = vector.shape_cast %17 : vector<4xf32> to vector<1x4xf32>
    %21 = vector.shape_cast %18 : vector<4xf32> to vector<1x4xf32>
    %22 = tpu.concatenate %19, %20, %21 in 0 : vector<1x4xf32>, vector<1x4xf32>, vector<1x4xf32> -> vector<3x4xf32>
    %c0_i32 = arith.constant 0 : i32
    %23 = arith.cmpi eq, %arg1, %c0_i32 : i32
    %24 = arith.extui %23 : i1 to i32
    %c0_i32_9 = arith.constant 0 : i32
    %25 = arith.cmpi ne, %24, %c0_i32_9 : i32
    scf.if %25 {
      %c0_12 = arith.constant 0 : index
      %c0_13 = arith.constant 0 : index
      %c0_14 = arith.constant 0 : index
      %29 = vector.load %arg4[%c0_12, %c0_13, %c0_14] : memref<1x3x4xf32, #tpu.memory_space<vmem>>, vector<1x3x4xf32>
      %30 = vector.shape_cast %29 : vector<1x3x4xf32> to vector<3x4xf32>
      %31 = vector.shape_cast %22 : vector<3x4xf32> to vector<1x3x4xf32>
      tpu.vector_store %arg4[%c0_12, %c0_13, %c0_14], %31 {strides = array<i32>} : memref<1x3x4xf32, #tpu.memory_space<vmem>>, vector<1x3x4xf32>,
    } else {
    }
    %c0_i32_10 = arith.constant 0 : i32
    %26 = arith.cmpi sgt, %arg1, %c0_i32_10 : i32
    %27 = arith.extui %26 : i1 to i32
    %c0_i32_11 = arith.constant 0 : i32
    %28 = arith.cmpi ne, %27, %c0_i32_11 : i32
    scf.if %28 {
      %c0_12 = arith.constant 0 : index
      %c0_13 = arith.constant 0 : index
      %c0_14 = arith.constant 0 : index
      %29 = vector.load %arg4[%c0_12, %c0_13, %c0_14] : memref<1x3x4xf32, #tpu.memory_space<vmem>>, vector<1x3x4xf32>
      %30 = vector.shape_cast %29 : vector<1x3x4xf32> to vector<3x4xf32>
      %31 = arith.addf %30, %22 : vector<3x4xf32>
      %c0_15 = arith.constant 0 : index
      %c0_16 = arith.constant 0 : index
      %c0_17 = arith.constant 0 : index
      %32 = vector.load %arg4[%c0_15, %c0_16, %c0_17] : memref<1x3x4xf32, #tpu.memory_space<vmem>>, vector<1x3x4xf32>
      %33 = vector.shape_cast %32 : vector<1x3x4xf32> to vector<3x4xf32>
      %34 = vector.shape_cast %31 : vector<3x4xf32> to vector<1x3x4xf32>
      tpu.vector_store %arg4[%c0_15, %c0_16, %c0_17], %34 {strides = array<i32>} : memref<1x3x4xf32, #tpu.memory_space<vmem>>, vector<1x3x4xf32>,
    } else {
    }
    return
  }
  func.func @transform_0(%arg0: i32, %arg1: i32) -> (i32, i32, i32) {
    %c0_i32 = arith.constant 0 : i32
    %c0_i32_0 = arith.constant 0 : i32
    return %arg0, %c0_i32, %arg1 : i32, i32, i32
  }
  func.func @transform_1(%arg0: i32, %arg1: i32) -> (i32, i32, i32) {
    %c0_i32 = arith.constant 0 : i32
    %c0_i32_0 = arith.constant 0 : i32
    return %arg0, %c0_i32, %arg1 : i32, i32, i32
  }
  func.func @transform_2(%arg0: i32, %arg1: i32) -> (i32, i32, i32) {
    %c0_i32 = arith.constant 0 : i32
    %c0_i32_0 = arith.constant 0 : i32
    %c0_i32_1 = arith.constant 0 : i32
    return %arg0, %c0_i32, %c0_i32_0 : i32, i32, i32
  }
}

</mosaic_0001>

<llo_original>
// kernel: soft_dice_loss.1
$region0: #{soft_dice_loss.1}
  #allocation0 [shape = 'u32[]', space=smem, size = 0x4, offset = 0x4, fixed_abs, tag = 'smem constant byte address 0x4 - core index']
  #allocation1 [shape = 'u32[144,128]{1,0:T(1,128)}', space=vmem, size = 0x12000, scoped, tag = 'internal scratch']
  %s0 = inlined_call_operand.vmem [shape: f32[2,4,256], index: 0, kind: input, shape index: {}]
  %s1 = inlined_call_operand.vmem [shape: bf16[2,4,256], index: 1, kind: input, shape index: {}]
  %s2 = inlined_call_operand.vmem [shape: f32[2,3,4], index: 2, kind: output, shape index: {}]
  %s3 = sld [smem:[#allocation0]]
  $region49: #{soft_dice_loss.1} parent=0
    _
  %s5 = ssub.s32 1, %s3
  %s6 = scalar_select 0, %s5, %s3
  loop: start=0, step=1, limit=4
  $region2: #{soft_dice_loss.1} parent=0 // loop_pre_header
    _
  $region3: #{soft_dice_loss.1} parent=0 // loop_header
    %s8 = sphi 0, %s12
    %p9 = scmp.ge.s32.totalorder %s8, 4
    %s15 = sphi 0, %s27
    %s16 = sphi 0, %s23
    %s17 = sphi 0, %s15
    %s18 = sphi 0, %s16
    %s19 = sphi 0, %s17
    %s20 = sphi 0, %s18
    %s32 = sphi 0, %s34
    %s35 = sphi 0, %s32
    %s36 = sphi 0, %s35
    %s52 = sphi 0, %s36
    %s60 = sphi 0, %s62
    %s63 = sphi 0, %s60
    %s64 = sphi 0, %s63
    %s80 = sphi 0, %s64
    %s86 = sphi 0, %s88
    %s89 = sphi 0, %s86
    %s90 = sphi 0, %s89
    %s106 = sphi 0, %s90
  $region4: #{soft_dice_loss.1} parent=0 // loop_header_branch
    %11 = sbr.rel (%p9) target = $region8
  $region5: #{soft_dice_loss.1} parent=0 // loop_body
    %s13 = ssub.s32 %s8, 1
    %s14 = ssub.s32 %s8, 2
    %s21 = sadd.s32 1, %s16
    %p22 = scmp.ge.s32.totalorder %s21, 1
    %s23 = scalar_select %p22, 0, %s21
    %s24 = sadd.s32 1, %s15
    %s25 = scalar_select %p22, %s24, %s15
    %p26 = scmp.ge.s32.totalorder %s25, 2
    %s27 = scalar_select %p26, 0, %s25
    %s28 = ssub.s32 %s15, %s27
    %s29 = ssub.s32 %s16, %s23
    %s30 = sor.u32 %s28, %s29
    %p31 = scmp.eq.s32.totalorder %s30, 0
    %s33 = sadd.s32 %s32, 1
    %s34 = scalar_select %p31, %s32, %s33
    %p37 = pneg %p31
    %p38 = scmp.eq.s32.totalorder %s8, 1
    %p39 = por %p37, %p38
    %p40 = scmp.ne.s32.totalorder %s32, %s35
    %p41 = scmp.eq.s32.totalorder %s8, 0
    %p42 = por %p40, %p41
    %p43 = scmp.ne.s32.totalorder %s32, %s35
    %p44 = scmp.eq.s32.totalorder %s13, 1
    %p45 = por %p43, %p44
    %p46 = scmp.ne.s32.totalorder %s35, %s36
    %p47 = scmp.eq.s32.totalorder %s13, 0
    %p48 = por %p46, %p47
    %p49 = scmp.ne.s32.totalorder %s35, %s36
    %p50 = scmp.eq.s32.totalorder %s14, 1
    %p51 = por %p49, %p50
    %p53 = scmp.ne.s32.totalorder %s36, %s52
    %p54 = scmp.eq.s32.totalorder %s14, 0
    %p55 = por %p53, %p54
    %s56 = ssub.s32 %s15, %s27
    %s57 = ssub.s32 %s16, %s23
    %s58 = sor.u32 %s56, %s57
    %p59 = scmp.eq.s32.totalorder %s58, 0
    %s61 = sadd.s32 %s60, 1
    %s62 = scalar_select %p59, %s60, %s61
    %p65 = pneg %p59
    %p66 = scmp.eq.s32.totalorder %s8, 1
    %p67 = por %p65, %p66
    %p68 = scmp.ne.s32.totalorder %s60, %s63
    %p69 = scmp.eq.s32.totalorder %s8, 0
    %p70 = por %p68, %p69
    %p71 = scmp.ne.s32.totalorder %s60, %s63
    %p72 = scmp.eq.s32.totalorder %s13, 1
    %p73 = por %p71, %p72
    %p74 = scmp.ne.s32.totalorder %s63, %s64
    %p75 = scmp.eq.s32.totalorder %s13, 0
    %p76 = por %p74, %p75
    %p77 = scmp.ne.s32.totalorder %s63, %s64
    %p78 = scmp.eq.s32.totalorder %s14, 1
    %p79 = por %p77, %p78
    %p81 = scmp.ne.s32.totalorder %s64, %s80
    %p82 = scmp.eq.s32.totalorder %s14, 0
    %p83 = por %p81, %p82
    %s84 = ssub.s32 %s15, %s27
    %p85 = scmp.eq.s32.totalorder %s84, 0
    %s87 = sadd.s32 %s86, 1
    %s88 = scalar_select %p85, %s86, %s87
    %p91 = pneg %p85
    %p92 = scmp.eq.s32.totalorder %s8, 1
    %p93 = por %p91, %p92
    %p94 = scmp.ne.s32.totalorder %s86, %s89
    %p95 = scmp.eq.s32.totalorder %s8, 0
    %p96 = por %p94, %p95
    %p97 = scmp.ne.s32.totalorder %s86, %s89
    %p98 = scmp.eq.s32.totalorder %s13, 1
    %p99 = por %p97, %p98
    %p100 = scmp.ne.s32.totalorder %s89, %s90
    %p101 = scmp.eq.s32.totalorder %s13, 0
    %p102 = por %p100, %p101
    %p103 = scmp.ne.s32.totalorder %s89, %s90
    %p104 = scmp.eq.s32.totalorder %s14, 1
    %p105 = por %p103, %p104
    %p107 = scmp.ne.s32.totalorder %s90, %s106
    %p108 = scmp.eq.s32.totalorder %s14, 0
    %p109 = por %p107, %p108
    %p110 = scmp.le.s32.totalorder 1, %s8
    %p111 = scmp.lt.s32.totalorder %s8, 3
    %p112 = pnand %p110, %p111
    %p113 = pneg %p112
    // Predicated region
    $region9: #{soft_dice_loss.1} parent=5 // pred_check
      _
    $region10: #{soft_dice_loss.1} parent=5 // pred_check_branch
      %115 = sbr.rel (%p112) target = $region12
    $region11: #{soft_dice_loss.1} parent=5 // pred_region
      %s116 = ssub.s32 %s8, 1
    $region12: #{soft_dice_loss.1} parent=5 // pred_fallthru
      _
    %p117 = scmp.lt.s32.totalorder %s8, 2
    // Predicated region
    $region13: #{soft_dice_loss.1} parent=5 // pred_check
      %p118 = pneg %p117
    $region14: #{soft_dice_loss.1} parent=5 // pred_check_branch
      %120 = sbr.rel (%p118) target = $region16
    $region15: #{soft_dice_loss.1} parent=5 // pred_region
      // Predicated region
      $region17: #{soft_dice_loss.1} parent=15 // pred_check
        %p121 = pneg %p42
      $region18: #{soft_dice_loss.1} parent=15 // pred_check_branch
        %123 = sbr.rel (%p121) target = $region20
      $region19: #{soft_dice_loss.1} parent=15 // pred_region
        %s124 = smul.u32 2, %s16
        %p125 = scmp.lt.s32.totalorder %s15, 1
        %s126 = scalar_select %p125, %s15, 1
        %p127 = scmp.lt.s32.totalorder %s124, 1
        %s128 = scalar_select %p127, %s124, 1
        %s129 = smul.addr %s126, 2
        %s130 = sadd.s32 %s128, %s129
        %s131 = smul.addr %s130, 4
        %s132 = scalar_lea.vmem %s0, %s131
        %s133 = smul.u32 2, %s16
      $region20: #{soft_dice_loss.1} parent=15 // pred_fallthru
        _
      // Predicated region
      $region21: #{soft_dice_loss.1} parent=15 // pred_check
        %p134 = pneg %p70
      $region22: #{soft_dice_loss.1} parent=15 // pred_check_branch
        %136 = sbr.rel (%p134) target = $region24
      $region23: #{soft_dice_loss.1} parent=15 // pred_region
        %s137 = smul.u32 2, %s16
        %p138 = scmp.lt.s32.totalorder %s15, 1
        %s139 = scalar_select %p138, %s15, 1
        %p140 = scmp.lt.s32.totalorder %s137, 1
        %s141 = scalar_select %p140, %s137, 1
        %s142 = smul.addr %s139, 2
        %s143 = sadd.s32 %s141, %s142
        %s144 = smul.addr %s143, 2
        %s145 = scalar_lea.vmem %s1, %s144
        %s146 = smul.u32 2, %s16
      $region24: #{soft_dice_loss.1} parent=15 // pred_fallthru
        _
    $region16: #{soft_dice_loss.1} parent=5 // pred_fallthru
      _
    %p147 = scmp.le.s32.totalorder 1, %s8
    %p148 = scmp.lt.s32.totalorder %s8, 3
    %p149 = pnand %p147, %p148
    %p150 = pneg %p149
    // Predicated region
    $region25: #{soft_dice_loss.1} parent=5 // pred_check
      _
    $region26: #{soft_dice_loss.1} parent=5 // pred_check_branch
      %152 = sbr.rel (%p149) target = $region28
    $region27: #{soft_dice_loss.1} parent=5 // pred_region
      %s153 = ssub.s32 %s8, 1
      %s154 = smul.u32 2, %s18
      %p155 = scmp.lt.s32.totalorder %s17, 1
      %s156 = scalar_select %p155, %s17, 1
      %p157 = scmp.lt.s32.totalorder %s154, 1
      %s158 = scalar_select %p157, %s154, 1
      %s159 = smul.addr %s156, 2
      %s160 = sadd.s32 %s158, %s159
      %s161 = smul.addr %s160, 4
      %s162 = scalar_lea.vmem %s0, %s161
      %p163 = pneg %p48
      %p164 = pneg %p45
      %s165 = smul.u32 2, %s18
      %p166 = scmp.lt.s32.totalorder %s17, 1
      %s167 = scalar_select %p166, %s17, 1
      %p168 = scmp.lt.s32.totalorder %s165, 1
      %s169 = scalar_select %p168, %s165, 1
      %s170 = smul.addr %s167, 2
      %s171 = sadd.s32 %s169, %s170
      %s172 = smul.addr %s171, 2
      %s173 = scalar_lea.vmem %s1, %s172
      %p174 = pneg %p76
      %p175 = pneg %p73
      %p176 = pneg %p102
      %p177 = pneg %p99
      %p178 = scmp.lt.s32.totalorder %s17, 1
      %s179 = scalar_select %p178, %s17, 1
      %s180 = smul.addr %s179, 4
      %s181 = scalar_lea.vmem %s2, %s180
      %s182 = smul.u32 2, %s18
      %p183 = scmp.lt.s32.totalorder %s17, 1
      %s184 = scalar_select %p183, %s17, 1
      %p185 = scmp.lt.s32.totalorder %s182, 1
      %s186 = scalar_select %p185, %s182, 1
      %s187 = smul.addr %s184, 2
      %s188 = sadd.s32 %s186, %s187
      %s189 = smul.addr %s188, 4
      %s190 = scalar_lea.vmem %s0, %s189
      %s191 = smul.u32 2, %s18
      %s192 = smul.u32 2, %s18
      %p193 = scmp.lt.s32.totalorder %s17, 1
      %s194 = scalar_select %p193, %s17, 1
      %p195 = scmp.lt.s32.totalorder %s192, 1
      %s196 = scalar_select %p195, %s192, 1
      %s197 = smul.addr %s194, 2
      %s198 = sadd.s32 %s196, %s197
      %s199 = smul.addr %s198, 2
      %s200 = scalar_lea.vmem %s1, %s199
      %s201 = smul.u32 2, %s18
      %p202 = scmp.lt.s32.totalorder %s17, 1
      %s203 = scalar_select %p202, %s17, 1
      %s204 = smul.addr %s203, 4
      %s205 = scalar_lea.vmem %s2, %s204
      %v206 = vld [vmem:[%s190] sm:$0xff]
      %v207 = vld [vmem:[%s200] sm:$0xf]
      %v208 = vunpack.c.l.bf16 %v207
      %v210 = vcombine.high %v206, %v206
      %vm212 = vcmask 1043456
      %v213 = vsel %vm212, %v206, -inf
      %v214 = vrot.slane %v213, 4
      %v215 = vmax.f32 %v213, %v214
      %v216 = vrot.slane %v215, 2
      %v217 = vmax.f32 %v215, %v216
      %v218 = vrot.slane %v217, 1
      %v219 = vmax.f32 %v217, %v218
      %v220 = vsel %vm212, %v210, -inf
      %v221 = vrot.slane %v220, 4
      %v222 = vmax.f32 %v220, %v221
      %v223 = vrot.slane %v222, 2
      %v224 = vmax.f32 %v222, %v223
      %v225 = vrot.slane %v224, 1
      %v226 = vmax.f32 %v224, %v225
      %v229 = vcombine.low %v219, %v226
      %v231 = vsub.f32 %v206, %v229
      %v232 = vmul.f32 %v231, 1.442695
      %v233 = vpow.pop %v232
      %v235 = vcombine.high %v233, %v233
      %v237 = vsel %vm212, %v233, 0.0
      %v238 = vrot.slane %v237, 4
      %v239 = vadd.f32 %v237, %v238
      %v240 = vrot.slane %v239, 2
      %v241 = vadd.f32 %v239, %v240
      %v242 = vrot.slane %v241, 1
      %v243 = vadd.f32 %v241, %v242
      %v244 = vsel %vm212, %v235, 0.0
      %v245 = vrot.slane %v244, 4
      %v246 = vadd.f32 %v244, %v245
      %v247 = vrot.slane %v246, 2
      %v248 = vadd.f32 %v246, %v247
      %v249 = vrot.slane %v248, 1
      %v250 = vadd.f32 %v248, %v249
      %v251 = vrcp.pop %v243
      %v252 = vrcp.pop %v250
      %v255 = vcombine.low %v251, %v252
      %v257 = vmul.f32 %v233, %v255
      %v258 = vmul.f32 %v257, %v208
      %v260 = vcombine.high %v258, %v258
      %v262 = vsel %vm212, %v258, 0.0
      %v263 = vsel %vm212, %v260, 0.0
      %v264 = vadd.f32 %v262, %v263
      %265 = vadd.xlane.f32.xlu0 %v264
      %v266 = vpop.xlane.xlu0 %265
      %v268 = vcombine.high %v257, %v257
      %v270 = vsel %vm212, %v257, 0.0
      %v271 = vsel %vm212, %v268, 0.0
      %v272 = vadd.f32 %v270, %v271
      %273 = vadd.xlane.f32.xlu0 %v272
      %v274 = vpop.xlane.xlu0 %273
      %v276 = vcombine.high %v208, %v208
      %v278 = vsel %vm212, %v208, 0.0
      %v279 = vsel %vm212, %v276, 0.0
      %v280 = vadd.f32 %v278, %v279
      %281 = vadd.xlane.f32.xlu0 %v280
      %v282 = vpop.xlane.xlu0 %281
      %v284 = vlaneseq
      %v285 = vand.u32 %v284, 127
      %v286 = vlaneseq
      %v287 = vshrl.u32 %v286, 7
      %v288 = vsub.s32 %v285, %v287
      %v289 = vrot.slane %v266, %v288
      %v292 = vlaneseq
      %v293 = vshrl.u32 %v292, 7
      %v294 = vsub.s32 %v285, %v293
      %v295 = vrot.slane %v274, %v294
      %v298 = vlaneseq
      %v299 = vshrl.u32 %v298, 7
      %v300 = vsub.s32 %v285, %v299
      %v301 = vrot.slane %v282, %v300
      %vm303 = vcmask 1040384
      %v304 = vsel %vm303, %v289, %v295
      %vm305 = vcmask 1041408
      %v306 = vsel %vm305, %v304, %v301
      %p307 = scmp.eq.s32.totalorder %s18, 0
      // Predicated region
      $region29: #{soft_dice_loss.1} parent=27 // pred_check
        %p308 = pneg %p307
      $region30: #{soft_dice_loss.1} parent=27 // pred_check_branch
        %310 = sbr.rel (%p308) target = $region32
      $region31: #{soft_dice_loss.1} parent=27 // pred_region
        %vm311 = vcmask 26624
        %312 = vst.msk [vmem:[%s205] sm:$0x7] %vm311, %v306
      $region32: #{soft_dice_loss.1} parent=27 // pred_fallthru
        _
      %p313 = scmp.gt.s32.totalorder %s18, 0
      // Predicated region
      $region33: #{soft_dice_loss.1} parent=27 // pred_check
        %p314 = pneg %p313
      $region34: #{soft_dice_loss.1} parent=27 // pred_check_branch
        %316 = sbr.rel (%p314) target = $region36
      $region35: #{soft_dice_loss.1} parent=27 // pred_region
        %v317 = vld [vmem:[%s205] sm:$0x7]
        %v318 = vadd.f32 %v317, %v306
        %vm319 = vcmask 26624
        %320 = vst.msk [vmem:[%s205] sm:$0x7] %vm319, %v318
      $region36: #{soft_dice_loss.1} parent=27 // pred_fallthru
        _
      %p321 = scmp.lt.s32.totalorder %s17, 1
      %s322 = scalar_select %p321, %s17, 1
      %s323 = smul.addr %s322, 4
      %s324 = scalar_lea.vmem %s2, %s323
      // Predicated region
      $region37: #{soft_dice_loss.1} parent=27 // pred_check
        %p325 = pneg %p99
      $region38: #{soft_dice_loss.1} parent=27 // pred_check_branch
        %327 = sbr.rel (%p325) target = $region40
      $region39: #{soft_dice_loss.1} parent=27 // pred_region
        _
      $region40: #{soft_dice_loss.1} parent=27 // pred_fallthru
        _
    $region28: #{soft_dice_loss.1} parent=5 // pred_fallthru
      _
    %p328 = scmp.le.s32.totalorder 2, %s8
    // Predicated region
    $region41: #{soft_dice_loss.1} parent=5 // pred_check
      %p329 = pneg %p328
    $region42: #{soft_dice_loss.1} parent=5 // pred_check_branch
      %331 = sbr.rel (%p329) target = $region44
    $region43: #{soft_dice_loss.1} parent=5 // pred_region
      %s332 = ssub.s32 %s8, 2
      // Predicated region
      $region45: #{soft_dice_loss.1} parent=43 // pred_check
        %p333 = pneg %p105
      $region46: #{soft_dice_loss.1} parent=43 // pred_check_branch
        %335 = sbr.rel (%p333) target = $region48
      $region47: #{soft_dice_loss.1} parent=43 // pred_region
        %p336 = scmp.lt.s32.totalorder %s19, 1
        %s337 = scalar_select %p336, %s19, 1
        %s338 = smul.addr %s337, 4
        %s339 = scalar_lea.vmem %s2, %s338
      $region48: #{soft_dice_loss.1} parent=43 // pred_fallthru
        _
    $region44: #{soft_dice_loss.1} parent=5 // pred_fallthru
      _
  $region6: #{soft_dice_loss.1} parent=0 // loop_footer
    %s12 = sadd.s32 1, %s8
  $region7: #{soft_dice_loss.1} parent=0 // loop_footer_branch
    %7 = sbr.rel target = $region3
  $region8: #{soft_dice_loss.1} parent=0 // loop_exit
    _

</llo_original>
